<compile_context>
chip_gen: v5e
topology: v5e:2x2
jax: 0.10.0
libtpu: 0.0.40
codegen_flags: <defaults>
</compile_context>

<pallas_src>
import jax
import jax.numpy as jnp
from jax.experimental import pallas as pl
from jax.experimental.pallas import tpu as pltpu


NO = 128  # lane-padded output width (q1 in lane 0, q2 in lane 1, rest zero)


# ----------------------------------------------------------------------------
# Kernel
# ----------------------------------------------------------------------------
def critic_kernel(s_ref, a_ref, ws_ref, wa_ref, wh_ref, wo_ref, b_ref, o_ref):
    s = s_ref[...]                     # [TB, S]
    a = a_ref[...]                     # [TB, A]

    # Layer 1 (fused l1/l2/l5/l6): relu(s @ Ws + a @ Wa + b0) == [xs1|xa1|xs2|xa2]
    h1 = jnp.dot(s, ws_ref[...], preferred_element_type=jnp.float32)
    h1 = h1 + jnp.dot(a, wa_ref[...], preferred_element_type=jnp.float32)
    h1 = jnp.maximum(h1 + b_ref[0:1, :], 0.0)           # [TB, Hp]

    # Layer 2 (block-diag l3/l7): relu(h1 @ Wh + b1)
    h2 = jnp.dot(h1, wh_ref[...], preferred_element_type=jnp.float32)
    h2 = jnp.maximum(h2 + b_ref[1:2, :], 0.0)           # [TB, Hp]

    # Layer 3 (l4 | l8, lane-padded): q = h2 @ Wo + b2 -> [TB, NO] (q1, q2, 0..)
    n_out = o_ref.shape[-1]                              # static (== NO)
    q = jnp.dot(h2, wo_ref[...], preferred_element_type=jnp.float32)
    o_ref[...] = q + b_ref[2:3, 0:n_out]                 # unmasked 128-lane store


# ----------------------------------------------------------------------------
# Parameter construction (matches the PyTorch module's init)
# ----------------------------------------------------------------------------
def xavier_uniform(key, out_features, in_features):
    # matches torch.nn.init.xavier_uniform_ for a (out, in) weight
    bound = (6.0 / (in_features + out_features)) ** 0.5
    return jax.random.uniform(key, (out_features, in_features),
                              dtype=jnp.float32, minval=-bound, maxval=bound)


def make_critic_params(key, state_size, action_size, hidden_size):
    """Raw per-layer params in torch (out, in) layout, bias filled with 0.01."""
    half = hidden_size // 2
    shapes = [
        (half, state_size),          # l1
        (half, action_size),         # l2
        (hidden_size, hidden_size),  # l3
        (1, hidden_size),            # l4
        (half, state_size),          # l5
        (half, action_size),         # l6
        (hidden_size, hidden_size),  # l7
        (1, hidden_size),            # l8
    ]
    keys = jax.random.split(key, len(shapes))
    return [(xavier_uniform(k, o, i), jnp.full((o,), 0.01, jnp.float32))
            for k, (o, i) in zip(keys, shapes)]


def pack_critic_params(params, state_size, action_size, hidden_size):
    """Fuse the twin heads into wide, lane-padded weight slabs (done once)."""
    (w1, b1), (w2, b2), (w3, b3), (w4, b4), \
        (w5, b5), (w6, b6), (w7, b7), (w8, b8) = params
    H = hidden_size
    half = H // 2
    Hp = max(128, ((2 * H + 127) // 128) * 128)   # fused hidden dim, 128-lane padded

    ws = jnp.zeros((state_size, Hp), jnp.float32)
    ws = ws.at[:, 0:half].set(w1.T)
    ws = ws.at[:, H:H + half].set(w5.T)

    wa = jnp.zeros((action_size, Hp), jnp.float32)
    wa = wa.at[:, half:H].set(w2.T)
    wa = wa.at[:, H + half:2 * H].set(w6.T)

    wh = jnp.zeros((Hp, Hp), jnp.float32)
    wh = wh.at[0:H, 0:H].set(w3.T)
    wh = wh.at[H:2 * H, H:2 * H].set(w7.T)

    # Output projection padded to a full 128-lane slab (q1 -> lane 0, q2 -> lane 1).
    wo = jnp.zeros((Hp, NO), jnp.float32)
    wo = wo.at[0:H, 0].set(w4[0])
    wo = wo.at[H:2 * H, 1].set(w8[0])

    bias = jnp.zeros((3, Hp), jnp.float32)
    bias = bias.at[0, 0:half].set(b1)
    bias = bias.at[0, half:H].set(b2)
    bias = bias.at[0, H:H + half].set(b5)
    bias = bias.at[0, H + half:2 * H].set(b6)
    bias = bias.at[1, 0:H].set(b3)
    bias = bias.at[1, H:2 * H].set(b7)
    bias = bias.at[2, 0].set(b4[0])
    bias = bias.at[2, 1].set(b8[0])

    return ws, wa, wh, wo, bias


# ----------------------------------------------------------------------------
# Wrapper
# ----------------------------------------------------------------------------
def critic_forward(states, actions, packed, *, tile_b_max=512):
    ws, wa, wh, wo, bias = packed
    B, S = states.shape
    A = actions.shape[1]
    Hp = ws.shape[1]

    if B <= tile_b_max:
        tile_b = B
        Bp = B
    else:
        tile_b = tile_b_max
        Bp = pl.cdiv(B, tile_b) * tile_b

    if Bp != B:
        pad = Bp - B
        states = jnp.pad(states, ((0, pad), (0, 0)))
        actions = jnp.pad(actions, ((0, pad), (0, 0)))

    grid = (Bp // tile_b,)

    out = pl.pallas_call(
        critic_kernel,
        out_shape=jax.ShapeDtypeStruct((Bp, NO), jnp.float32),
        grid_spec=pltpu.PrefetchScalarGridSpec(
            num_scalar_prefetch=0,
            grid=grid,
            in_specs=[
                pl.BlockSpec((tile_b, S), lambda i: (i, 0)),   # states tile
                pl.BlockSpec((tile_b, A), lambda i: (i, 0)),   # actions tile
                pl.BlockSpec((S, Hp), lambda i: (0, 0)),       # fused l1|l5
                pl.BlockSpec((A, Hp), lambda i: (0, 0)),       # fused l2|l6
                pl.BlockSpec((Hp, Hp), lambda i: (0, 0)),      # block-diag l3/l7
                pl.BlockSpec((Hp, NO), lambda i: (0, 0)),      # l4|l8 (lane-padded)
                pl.BlockSpec((3, Hp), lambda i: (0, 0)),       # packed biases
            ],
            out_specs=pl.BlockSpec((tile_b, NO), lambda i: (i, 0)),
        ),
        compiler_params=pltpu.CompilerParams(
            dimension_semantics=("parallel",)),
    )(states, actions, ws, wa, wh, wo, bias)

    q = out[:B]
    return q[:, 0:1], q[:, 1:2]


# ----------------------------------------------------------------------------
# Pure-JAX reference mirroring the PyTorch forward exactly
# ----------------------------------------------------------------------------
def critic_forward_ref(states, actions, params):
    (w1, b1), (w2, b2), (w3, b3), (w4, b4), \
        (w5, b5), (w6, b6), (w7, b7), (w8, b8) = params
    xs = jax.nn.relu(states @ w1.T + b1)
    xa = jax.nn.relu(actions @ w2.T + b2)
    x = jnp.concatenate([xs, xa], axis=1)
    x = jax.nn.relu(x @ w3.T + b3)
    x1 = x @ w4.T + b4
    xs = jax.nn.relu(states @ w5.T + b5)
    xa = jax.nn.relu(actions @ w6.T + b6)
    x = jnp.concatenate([xs, xa], axis=1)
    x = jax.nn.relu(x @ w7.T + b7)
    x2 = x @ w8.T + b8
    return x1, x2


if __name__ == "__main__":
    state_size, action_size, hidden_size = 16, 8, 32
    batch = 8

    key = jax.random.PRNGKey(0)
    k_params, k_s, k_a, k_s2, k_a2 = jax.random.split(key, 5)

    params = make_critic_params(k_params, state_size, action_size, hidden_size)
    packed = pack_critic_params(params, state_size, action_size, hidden_size)

    # --- small batch (single grid step) ---
    states = jax.random.normal(k_s, (batch, state_size), jnp.float32)
    actions = jax.random.uniform(k_a, (batch, action_size), jnp.float32,
                                 minval=-1.0, maxval=1.0)
    q1, q2 = critic_forward(states, actions, packed)
    jax.block_until_ready((q1, q2))
    q1_ref, q2_ref = critic_forward_ref(states, actions, params)
    assert q1.shape == (batch, 1) and q2.shape == (batch, 1)
    assert jnp.allclose(q1, q1_ref, atol=1e-5, rtol=1e-5)
    assert jnp.allclose(q2, q2_ref, atol=1e-5, rtol=1e-5)

    # --- larger batch (exercises batch tiling + padding path) ---
    big = 600
    states_b = jax.random.normal(k_s2, (big, state_size), jnp.float32)
    actions_b = jax.random.uniform(k_a2, (big, action_size), jnp.float32,
                                   minval=-1.0, maxval=1.0)
    q1b, q2b = critic_forward(states_b, actions_b, packed)
    jax.block_until_ready((q1b, q2b))
    q1b_ref, q2b_ref = critic_forward_ref(states_b, actions_b, params)
    assert q1b.shape == (big, 1) and q2b.shape == (big, 1)
    assert jnp.allclose(q1b, q1b_ref, atol=1e-4, rtol=1e-4)
    assert jnp.allclose(q2b, q2b_ref, atol=1e-4, rtol=1e-4)

    print("KERNEL_OK")
</pallas_src>

<mosaic_0001>
module attributes {stable_mosaic.version = 11 : i64} {
  func.func @critic_kernel(%arg0: i32, %arg1: memref<8x16xf32, #tpu.memory_space<vmem>>, %arg2: memref<8x8xf32, #tpu.memory_space<vmem>>, %arg3: memref<16x128xf32, #tpu.memory_space<vmem>>, %arg4: memref<8x128xf32, #tpu.memory_space<vmem>>, %arg5: memref<128x128xf32, #tpu.memory_space<vmem>>, %arg6: memref<128x128xf32, #tpu.memory_space<vmem>>, %arg7: memref<3x128xf32, #tpu.memory_space<vmem>>, %arg8: memref<8x128xf32, #tpu.memory_space<vmem>>) attributes {dimension_semantics = [#tpu.dimension_semantics<parallel>], iteration_bounds = array<i64: 1>, scalar_prefetch = 0 : i64, scratch_operands = 0 : i64, tpu.core_type = #tpu.core_type<tc>, window_params = [{transform_indices = @transform_0, window_bounds = array<i64: 8, 16>}, {transform_indices = @transform_1, window_bounds = array<i64: 8, 8>}, {pipeline_mode = #tpu.pipeline_mode<synchronous>, transform_indices = @transform_2, window_bounds = array<i64: 16, 128>}, {pipeline_mode = #tpu.pipeline_mode<synchronous>, transform_indices = @transform_3, window_bounds = array<i64: 8, 128>}, {pipeline_mode = #tpu.pipeline_mode<synchronous>, transform_indices = @transform_4, window_bounds = array<i64: 128, 128>}, {pipeline_mode = #tpu.pipeline_mode<synchronous>, transform_indices = @transform_5, window_bounds = array<i64: 128, 128>}, {pipeline_mode = #tpu.pipeline_mode<synchronous>, transform_indices = @transform_6, window_bounds = array<i64: 3, 128>}, {transform_indices = @transform_7, window_bounds = array<i64: 8, 128>}]} {
    %c0 = arith.constant 0 : index
    %c0_0 = arith.constant 0 : index
    %0 = vector.load %arg1[%c0, %c0_0] : memref<8x16xf32, #tpu.memory_space<vmem>>, vector<8x16xf32>
    %c0_1 = arith.constant 0 : index
    %c0_2 = arith.constant 0 : index
    %1 = vector.load %arg2[%c0_1, %c0_2] : memref<8x8xf32, #tpu.memory_space<vmem>>, vector<8x8xf32>
    %c0_3 = arith.constant 0 : index
    %c0_4 = arith.constant 0 : index
    %2 = vector.load %arg3[%c0_3, %c0_4] : memref<16x128xf32, #tpu.memory_space<vmem>>, vector<16x128xf32>
    %cst = arith.constant dense<0.000000e+00> : vector<8x128xf32>
    %3 = tpu.matmul %0, %2, %cst {dimension_numbers = #tpu.dot_dimension_numbers<[1], [0], [0], [1], [0, 0, 1, 1], [], []>} : vector<8x16xf32>, vector<16x128xf32>, vector<8x128xf32> -> vector<8x128xf32>
    %c0_5 = arith.constant 0 : index
    %c0_6 = arith.constant 0 : index
    %4 = vector.load %arg4[%c0_5, %c0_6] : memref<8x128xf32, #tpu.memory_space<vmem>>, vector<8x128xf32>
    %cst_7 = arith.constant dense<0.000000e+00> : vector<8x128xf32>
    %5 = tpu.matmul %1, %4, %cst_7 {dimension_numbers = #tpu.dot_dimension_numbers<[1], [0], [0], [1], [0, 0, 1, 1], [], []>} : vector<8x8xf32>, vector<8x128xf32>, vector<8x128xf32> -> vector<8x128xf32>
    %6 = arith.addf %3, %5 : vector<8x128xf32>
    %c0_8 = arith.constant 0 : index
    %c0_9 = arith.constant 0 : index
    %7 = vector.load %arg7[%c0_8, %c0_9] : memref<3x128xf32, #tpu.memory_space<vmem>>, vector<1x128xf32>
    %8 = vector.broadcast %7 : vector<1x128xf32> to vector<8x128xf32>
    %9 = arith.addf %6, %8 : vector<8x128xf32>
    %cst_10 = arith.constant 0.000000e+00 : f32
    %10 = vector.broadcast %cst_10 : f32 to vector<8x128xf32>
    %11 = arith.maximumf %9, %10 : vector<8x128xf32>
    %c0_11 = arith.constant 0 : index
    %c0_12 = arith.constant 0 : index
    %12 = vector.load %arg5[%c0_11, %c0_12] : memref<128x128xf32, #tpu.memory_space<vmem>>, vector<128x128xf32>
    %cst_13 = arith.constant dense<0.000000e+00> : vector<8x128xf32>
    %13 = tpu.matmul %11, %12, %cst_13 {dimension_numbers = #tpu.dot_dimension_numbers<[1], [0], [0], [1], [0, 0, 1, 1], [], []>} : vector<8x128xf32>, vector<128x128xf32>, vector<8x128xf32> -> vector<8x128xf32>
    %c1 = arith.constant 1 : index
    %c0_14 = arith.constant 0 : index
    %14 = vector.load %arg7[%c1, %c0_14] : memref<3x128xf32, #tpu.memory_space<vmem>>, vector<1x128xf32>
    %15 = vector.broadcast %14 : vector<1x128xf32> to vector<8x128xf32>
    %16 = arith.addf %13, %15 : vector<8x128xf32>
    %cst_15 = arith.constant 0.000000e+00 : f32
    %17 = vector.broadcast %cst_15 : f32 to vector<8x128xf32>
    %18 = arith.maximumf %16, %17 : vector<8x128xf32>
    %c0_16 = arith.constant 0 : index
    %c0_17 = arith.constant 0 : index
    %19 = vector.load %arg6[%c0_16, %c0_17] : memref<128x128xf32, #tpu.memory_space<vmem>>, vector<128x128xf32>
    %cst_18 = arith.constant dense<0.000000e+00> : vector<8x128xf32>
    %20 = tpu.matmul %18, %19, %cst_18 {dimension_numbers = #tpu.dot_dimension_numbers<[1], [0], [0], [1], [0, 0, 1, 1], [], []>} : vector<8x128xf32>, vector<128x128xf32>, vector<8x128xf32> -> vector<8x128xf32>
    %c2 = arith.constant 2 : index
    %c0_19 = arith.constant 0 : index
    %21 = vector.load %arg7[%c2, %c0_19] : memref<3x128xf32, #tpu.memory_space<vmem>>, vector<1x128xf32>
    %22 = vector.broadcast %21 : vector<1x128xf32> to vector<8x128xf32>
    %23 = arith.addf %20, %22 : vector<8x128xf32>
    %c0_20 = arith.constant 0 : index
    %c0_21 = arith.constant 0 : index
    %24 = vector.load %arg8[%c0_20, %c0_21] : memref<8x128xf32, #tpu.memory_space<vmem>>, vector<8x128xf32>
    tpu.vector_store %arg8[%c0_20, %c0_21], %23 {strides = array<i32>} : memref<8x128xf32, #tpu.memory_space<vmem>>, vector<8x128xf32>,
    return
  }
  func.func @transform_0(%arg0: i32) -> (i32, i32) {
    %c0_i32 = arith.constant 0 : i32
    %c0_i32_0 = arith.constant 0 : i32
    return %arg0, %c0_i32 : i32, i32
  }
  func.func @transform_1(%arg0: i32) -> (i32, i32) {
    %c0_i32 = arith.constant 0 : i32
    %c0_i32_0 = arith.constant 0 : i32
    return %arg0, %c0_i32 : i32, i32
  }
  func.func @transform_2(%arg0: i32) -> (i32, i32) {
    %c0_i32 = arith.constant 0 : i32
    %c0_i32_0 = arith.constant 0 : i32
    %c0_i32_1 = arith.constant 0 : i32
    return %c0_i32, %c0_i32_0 : i32, i32
  }
  func.func @transform_3(%arg0: i32) -> (i32, i32) {
    %c0_i32 = arith.constant 0 : i32
    %c0_i32_0 = arith.constant 0 : i32
    %c0_i32_1 = arith.constant 0 : i32
    return %c0_i32, %c0_i32_0 : i32, i32
  }
  func.func @transform_4(%arg0: i32) -> (i32, i32) {
    %c0_i32 = arith.constant 0 : i32
    %c0_i32_0 = arith.constant 0 : i32
    %c0_i32_1 = arith.constant 0 : i32
    return %c0_i32, %c0_i32_0 : i32, i32
  }
  func.func @transform_5(%arg0: i32) -> (i32, i32) {
    %c0_i32 = arith.constant 0 : i32
    %c0_i32_0 = arith.constant 0 : i32
    %c0_i32_1 = arith.constant 0 : i32
    return %c0_i32, %c0_i32_0 : i32, i32
  }
  func.func @transform_6(%arg0: i32) -> (i32, i32) {
    %c0_i32 = arith.constant 0 : i32
    %c0_i32_0 = arith.constant 0 : i32
    %c0_i32_1 = arith.constant 0 : i32
    return %c0_i32, %c0_i32_0 : i32, i32
  }
  func.func @transform_7(%arg0: i32) -> (i32, i32) {
    %c0_i32 = arith.constant 0 : i32
    %c0_i32_0 = arith.constant 0 : i32
    return %arg0, %c0_i32 : i32, i32
  }
}

</mosaic_0001>

<llo_original>
// kernel: tpu_custom_call.1
$region0: #{tpu_custom_call.1}
  #allocation0 [shape = 'u32[]', space=smem, size = 0x4, offset = 0x4, fixed_abs, tag = 'smem constant byte address 0x4 - core index']
  #allocation1 [shape = 'u32[72,128]{1,0:T(1,128)}', space=vmem, size = 0x9000, scoped, tag = 'internal scratch']
  %s0 = inlined_call_operand.hbm [shape: f32[8,16], index: 0, kind: input, shape index: {}]
  %s1 = inlined_call_operand.hbm [shape: f32[8,8], index: 1, kind: input, shape index: {}]
  %s2 = inlined_call_operand.hbm [shape: f32[16,128], index: 2, kind: input, shape index: {}]
  %s3 = inlined_call_operand.hbm [shape: f32[8,128], index: 3, kind: input, shape index: {}]
  %s4 = inlined_call_operand.hbm [shape: f32[128,128], index: 4, kind: input, shape index: {}]
  %s5 = inlined_call_operand.hbm [shape: f32[128,128], index: 5, kind: input, shape index: {}]
  %s6 = inlined_call_operand.vmem [shape: f32[3,128], index: 6, kind: input, shape index: {}]
  %s7 = inlined_call_operand.hbm [shape: f32[8,128], index: 7, kind: output, shape index: {}]
  %s8 = sld [smem:[#allocation0]]
  $region62: #{tpu_custom_call.1} parent=0
    _
  %s10 = ssub.s32 1, %s8
  %s11 = scalar_select 0, %s10, %s8
  $region1: #{tpu_custom_call.1} parent=0
    #allocation2 [shape = 'u8[4096]{0}', space=vmem, size = 0x1000, scoped, tag = 'input window, operand 0, single buffered']
    #allocation3 [shape = 's32[1]{0}', space=sflag, size = 0x4, scoped, tag = 'scoped memory for tpu_custom_call.1']
    #allocation4 [shape = 's32[1]{0}', space=sflag, size = 0x4, scoped, tag = 'scoped memory for tpu_custom_call.1']
    #allocation5 [shape = 'u8[4096]{0}', space=vmem, size = 0x1000, scoped, tag = 'input window, operand 1, single buffered']
    #allocation6 [shape = 's32[1]{0}', space=sflag, size = 0x4, scoped, tag = 'scoped memory for tpu_custom_call.1']
    #allocation7 [shape = 'u8[8192]{0}', space=vmem, size = 0x2000, scoped, tag = 'input window, operand 2, single buffered']
    #allocation8 [shape = 'u8[4096]{0}', space=vmem, size = 0x1000, scoped, tag = 'input window, operand 3, single buffered']
    #allocation9 [shape = 's32[1]{0}', space=sflag, size = 0x4, scoped, tag = 'scoped memory for tpu_custom_call.1']
    #allocation10 [shape = 'u8[65536]{0}', space=vmem, size = 0x10000, scoped, tag = 'input window, operand 4, single buffered']
    #allocation11 [shape = 'u8[65536]{0}', space=vmem, size = 0x10000, scoped, tag = 'input window, operand 5, single buffered']
    #allocation12 [shape = 's32[1]{0}', space=sflag, size = 0x4, scoped, tag = 'scoped memory for tpu_custom_call.1']
    #allocation13 [shape = 'u8[4096]{0}', space=vmem, size = 0x1000, scoped, tag = 'output window, operand 0, single buffered']
    %12 = vsyncpa [#allocation3], 0
    %13 = vsyncpa [#allocation6], 0
    %14 = vsyncpa [#allocation9], 0
    %15 = vsyncpa [#allocation12], 0
    %16 = vsyncpa [#allocation4], 0
    // Predicated region
    $region2: #{tpu_custom_call.1} parent=1 // pred_check
      _
    $region3: #{tpu_custom_call.1} parent=1 // pred_check_branch
      %18 = sbr.rel (0) target = $region5
    $region4: #{tpu_custom_call.1} parent=1 // pred_region
      %20 = vsyncadd [#allocation3], 0
      %s22 = sshll.u32 %s0, 4
      %s23 = int_to_ptr.hbm [resolvable:$true] %s22
      %s24 = sshll.u32 [#allocation2], 4
      %s25 = int_to_ptr.vmem [resolvable:$true] %s24
      %27 = dma.hbm_to_vmem [thread:$0]  %s23, 128, %s25, [#allocation3]
    $region5: #{tpu_custom_call.1} parent=1 // pred_fallthru
      _
    // Predicated region
    $region6: #{tpu_custom_call.1} parent=1 // pred_check
      _
    $region7: #{tpu_custom_call.1} parent=1 // pred_check_branch
      %29 = sbr.rel (0) target = $region9
    $region8: #{tpu_custom_call.1} parent=1 // pred_region
      %31 = vsyncadd [#allocation6], 0
      %s33 = sshll.u32 %s1, 4
      %s34 = int_to_ptr.hbm [resolvable:$true] %s33
      %s35 = sshll.u32 [#allocation5], 4
      %s36 = int_to_ptr.vmem [resolvable:$true] %s35
      %38 = dma.hbm_to_vmem [thread:$0]  %s34, 128, %s36, [#allocation6]
    $region9: #{tpu_custom_call.1} parent=1 // pred_fallthru
      _
    // Predicated region
    $region10: #{tpu_custom_call.1} parent=1 // pred_check
      _
    $region11: #{tpu_custom_call.1} parent=1 // pred_check_branch
      %40 = sbr.rel (0) target = $region13
    $region12: #{tpu_custom_call.1} parent=1 // pred_region
      %42 = vsyncadd [#allocation6], 0
      %s43 = sshll.u32 %s2, 4
      %s44 = int_to_ptr.hbm [resolvable:$true] %s43
      %s45 = sshll.u32 [#allocation7], 4
      %s46 = int_to_ptr.vmem [resolvable:$true] %s45
      %51 = dma.hbm_to_vmem [thread:$0]  %s44, 256, %s46, [#allocation6], 128, 128, 8
    $region13: #{tpu_custom_call.1} parent=1 // pred_fallthru
      _
    // Predicated region
    $region14: #{tpu_custom_call.1} parent=1 // pred_check
      _
    $region15: #{tpu_custom_call.1} parent=1 // pred_check_branch
      %53 = sbr.rel (0) target = $region17
    $region16: #{tpu_custom_call.1} parent=1 // pred_region
      %55 = vsyncadd [#allocation9], 0
      %s57 = sshll.u32 %s3, 4
      %s58 = int_to_ptr.hbm [resolvable:$true] %s57
      %s59 = sshll.u32 [#allocation8], 4
      %s60 = int_to_ptr.vmem [resolvable:$true] %s59
      %62 = dma.hbm_to_vmem [thread:$0]  %s58, 128, %s60, [#allocation9]
    $region17: #{tpu_custom_call.1} parent=1 // pred_fallthru
      _
    // Predicated region
    $region18: #{tpu_custom_call.1} parent=1 // pred_check
      _
    $region19: #{tpu_custom_call.1} parent=1 // pred_check_branch
      %64 = sbr.rel (0) target = $region21
    $region20: #{tpu_custom_call.1} parent=1 // pred_region
      %66 = vsyncadd [#allocation9], 0
      %s67 = sshll.u32 %s4, 4
      %s68 = int_to_ptr.hbm [resolvable:$true] %s67
      %s69 = sshll.u32 [#allocation10], 4
      %s70 = int_to_ptr.vmem [resolvable:$true] %s69
      %75 = dma.hbm_to_vmem [thread:$0]  %s68, 2048, %s70, [#allocation9], 128, 128, 8
    $region21: #{tpu_custom_call.1} parent=1 // pred_fallthru
      _
    // Predicated region
    $region22: #{tpu_custom_call.1} parent=1 // pred_check
      _
    $region23: #{tpu_custom_call.1} parent=1 // pred_check_branch
      %77 = sbr.rel (0) target = $region25
    $region24: #{tpu_custom_call.1} parent=1 // pred_region
      %79 = vsyncadd [#allocation12], 0
      %s80 = sshll.u32 %s5, 4
      %s81 = int_to_ptr.hbm [resolvable:$true] %s80
      %s82 = sshll.u32 [#allocation11], 4
      %s83 = int_to_ptr.vmem [resolvable:$true] %s82
      %88 = dma.hbm_to_vmem [thread:$0]  %s81, 2048, %s83, [#allocation12], 128, 128, 8
    $region25: #{tpu_custom_call.1} parent=1 // pred_fallthru
      _
    // Predicated region
    $region26: #{tpu_custom_call.1} parent=1 // pred_check
      _
    $region27: #{tpu_custom_call.1} parent=1 // pred_check_branch
      %90 = sbr.rel (0) target = $region29
    $region28: #{tpu_custom_call.1} parent=1 // pred_region
      _
    $region29: #{tpu_custom_call.1} parent=1 // pred_fallthru
      _
    // Predicated region
    $region30: #{tpu_custom_call.1} parent=1 // pred_check
      _
    $region31: #{tpu_custom_call.1} parent=1 // pred_check_branch
      %92 = sbr.rel (0) target = $region33
    $region32: #{tpu_custom_call.1} parent=1 // pred_region
      %94 = dma.done [#allocation3], 128
    $region33: #{tpu_custom_call.1} parent=1 // pred_fallthru
      _
    // Predicated region
    $region34: #{tpu_custom_call.1} parent=1 // pred_check
      _
    $region35: #{tpu_custom_call.1} parent=1 // pred_check_branch
      %96 = sbr.rel (0) target = $region37
    $region36: #{tpu_custom_call.1} parent=1 // pred_region
      %98 = dma.done [#allocation6], 128
    $region37: #{tpu_custom_call.1} parent=1 // pred_fallthru
      _
    // Predicated region
    $region38: #{tpu_custom_call.1} parent=1 // pred_check
      _
    $region39: #{tpu_custom_call.1} parent=1 // pred_check_branch
      %100 = sbr.rel (0) target = $region41
    $region40: #{tpu_custom_call.1} parent=1 // pred_region
      %102 = dma.done [#allocation6], 256
    $region41: #{tpu_custom_call.1} parent=1 // pred_fallthru
      _
    // Predicated region
    $region42: #{tpu_custom_call.1} parent=1 // pred_check
      _
    $region43: #{tpu_custom_call.1} parent=1 // pred_check_branch
      %104 = sbr.rel (0) target = $region45
    $region44: #{tpu_custom_call.1} parent=1 // pred_region
      %106 = dma.done [#allocation9], 128
    $region45: #{tpu_custom_call.1} parent=1 // pred_fallthru
      _
    // Predicated region
    $region46: #{tpu_custom_call.1} parent=1 // pred_check
      _
    $region47: #{tpu_custom_call.1} parent=1 // pred_check_branch
      %108 = sbr.rel (0) target = $region49
    $region48: #{tpu_custom_call.1} parent=1 // pred_region
      %110 = dma.done [#allocation9], 2048
    $region49: #{tpu_custom_call.1} parent=1 // pred_fallthru
      _
    // Predicated region
    $region50: #{tpu_custom_call.1} parent=1 // pred_check
      _
    $region51: #{tpu_custom_call.1} parent=1 // pred_check_branch
      %112 = sbr.rel (0) target = $region53
    $region52: #{tpu_custom_call.1} parent=1 // pred_region
      %114 = dma.done [#allocation12], 2048
    $region53: #{tpu_custom_call.1} parent=1 // pred_fallthru
      _
    %v115 = vld [vmem:[#allocation2] sm:$0xff]
    %v116 = vld [vmem:[#allocation5] sm:$0xff]
    %v117 = vld [vmem:[#allocation7] sm:$0xff]
    %v118 = vld [vmem:[#allocation7 + $0x8] sm:$0xff]
    %v119 = vld [vmem:[#allocation8] sm:$0xff]
    %vm120 = vcmask 64512
    %v122 = vsel %vm120, %v116, 0
    %124 = vmatpush.msra.mxu0 0.0
    %125 = vmatpush.msra.mxu0 0.0
    %126 = vmatpush.msra.mxu0 0.0
    %127 = vmatpush.msra.mxu0 0.0
    %128 = vmatpush.msra.mxu0 0.0
    %129 = vmatpush.msra.mxu0 0.0
    %130 = vmatpush.msra.mxu0 0.0
    %131 = vmatpush.msra.mxu0 0.0
    %132 = vmatpush.msra.mxu0 0.0
    %133 = vmatpush.msra.mxu0 0.0
    %134 = vmatpush.msra.mxu0 0.0
    %135 = vmatpush.msra.mxu0 0.0
    %136 = vmatpush.msra.mxu0 0.0
    %137 = vmatpush.msra.mxu0 0.0
    %138 = vmatpush.msra.mxu0 0.0
    %139 = vmatpush.msra.mxu0 %v119
    %140 = vmatmul.f32.gmra.mxu0 %v122
    %v141 = vpop.f32.mrf.mxu0
    %v142 = vadd.f32 0.0, %v141
    %143 = vdwg.mxu0
    %vm144 = vcmask 130048
    %v146 = vsel %vm144, %v115, 0
    %148 = vmatpush.msra.mxu0 0.0
    %149 = vmatpush.msra.mxu0 0.0
    %150 = vmatpush.msra.mxu0 0.0
    %151 = vmatpush.msra.mxu0 0.0
    %152 = vmatpush.msra.mxu0 0.0
    %153 = vmatpush.msra.mxu0 0.0
    %154 = vmatpush.msra.mxu0 0.0
    %155 = vmatpush.msra.mxu0 0.0
    %156 = vmatpush.msra.mxu0 0.0
    %157 = vmatpush.msra.mxu0 0.0
    %158 = vmatpush.msra.mxu0 0.0
    %159 = vmatpush.msra.mxu0 0.0
    %160 = vmatpush.msra.mxu0 0.0
    %161 = vmatpush.msra.mxu0 0.0
    %162 = vmatpush.msra.mxu0 %v118
    %163 = vmatpush.msra.mxu0 %v117
    %164 = vmatmul.f32.gmra.mxu0 %v146
    %v165 = vpop.f32.mrf.mxu0
    %v166 = vadd.f32 %v142, %v165
    %167 = vdwg.mxu0
    %v168 = vld [vmem:[%s6] sm:$0x1]
    %v169 = vperm.slane %v168, 0
    %v170 = vadd.f32 %v166, %v169
    %v171 = vmax.f32 %v170, 0.0
    %v172 = vld [vmem:[#allocation10] sm:$0xff]
    %v173 = vld [vmem:[#allocation10 + $0x8] sm:$0xff]
    %v174 = vld [vmem:[#allocation10 + $0x10] sm:$0xff]
    %v175 = vld [vmem:[#allocation10 + $0x18] sm:$0xff]
    %v176 = vld [vmem:[#allocation10 + $0x20] sm:$0xff]
    %v177 = vld [vmem:[#allocation10 + $0x28] sm:$0xff]
    %v178 = vld [vmem:[#allocation10 + $0x30] sm:$0xff]
    %v179 = vld [vmem:[#allocation10 + $0x38] sm:$0xff]
    %v180 = vld [vmem:[#allocation10 + $0x40] sm:$0xff]
    %v181 = vld [vmem:[#allocation10 + $0x48] sm:$0xff]
    %v182 = vld [vmem:[#allocation10 + $0x50] sm:$0xff]
    %v183 = vld [vmem:[#allocation10 + $0x58] sm:$0xff]
    %v184 = vld [vmem:[#allocation10 + $0x60] sm:$0xff]
    %v185 = vld [vmem:[#allocation10 + $0x68] sm:$0xff]
    %v186 = vld [vmem:[#allocation10 + $0x70] sm:$0xff]
    %v187 = vld [vmem:[#allocation10 + $0x78] sm:$0xff]
    %v188 = vld [vmem:[%s6 + $0x1] sm:$0x1]
    %v189 = vperm.slane %v188, 0
    %190 = vmatpush.msra.mxu0 %v187
    %191 = vmatpush.msra.mxu0 %v186
    %192 = vmatpush.msra.mxu0 %v185
    %193 = vmatpush.msra.mxu0 %v184
    %194 = vmatpush.msra.mxu0 %v183
    %195 = vmatpush.msra.mxu0 %v182
    %196 = vmatpush.msra.mxu0 %v181
    %197 = vmatpush.msra.mxu0 %v180
    %198 = vmatpush.msra.mxu0 %v179
    %199 = vmatpush.msra.mxu0 %v178
    %200 = vmatpush.msra.mxu0 %v177
    %201 = vmatpush.msra.mxu0 %v176
    %202 = vmatpush.msra.mxu0 %v175
    %203 = vmatpush.msra.mxu0 %v174
    %204 = vmatpush.msra.mxu0 %v173
    %205 = vmatpush.msra.mxu0 %v172
    %206 = vmatmul.f32.gmra.mxu0 %v171
    %v207 = vpop.f32.mrf.mxu0
    %v208 = vadd.f32 %v189, %v207
    %209 = vdwg.mxu0
    %v210 = vmax.f32 %v208, 0.0
    %v211 = vld [vmem:[#allocation11] sm:$0xff]
    %v212 = vld [vmem:[#allocation11 + $0x8] sm:$0xff]
    %v213 = vld [vmem:[#allocation11 + $0x10] sm:$0xff]
    %v214 = vld [vmem:[#allocation11 + $0x18] sm:$0xff]
    %v215 = vld [vmem:[#allocation11 + $0x20] sm:$0xff]
    %v216 = vld [vmem:[#allocation11 + $0x28] sm:$0xff]
    %v217 = vld [vmem:[#allocation11 + $0x30] sm:$0xff]
    %v218 = vld [vmem:[#allocation11 + $0x38] sm:$0xff]
    %v219 = vld [vmem:[#allocation11 + $0x40] sm:$0xff]
    %v220 = vld [vmem:[#allocation11 + $0x48] sm:$0xff]
    %v221 = vld [vmem:[#allocation11 + $0x50] sm:$0xff]
    %v222 = vld [vmem:[#allocation11 + $0x58] sm:$0xff]
    %v223 = vld [vmem:[#allocation11 + $0x60] sm:$0xff]
    %v224 = vld [vmem:[#allocation11 + $0x68] sm:$0xff]
    %v225 = vld [vmem:[#allocation11 + $0x70] sm:$0xff]
    %v226 = vld [vmem:[#allocation11 + $0x78] sm:$0xff]
    %v227 = vld [vmem:[%s6 + $0x2] sm:$0x1]
    %v228 = vperm.slane %v227, 0
    %229 = vmatpush.msra.mxu0 %v226
    %230 = vmatpush.msra.mxu0 %v225
    %231 = vmatpush.msra.mxu0 %v224
    %232 = vmatpush.msra.mxu0 %v223
    %233 = vmatpush.msra.mxu0 %v222
    %234 = vmatpush.msra.mxu0 %v221
    %235 = vmatpush.msra.mxu0 %v220
    %236 = vmatpush.msra.mxu0 %v219
    %237 = vmatpush.msra.mxu0 %v218
    %238 = vmatpush.msra.mxu0 %v217
    %239 = vmatpush.msra.mxu0 %v216
    %240 = vmatpush.msra.mxu0 %v215
    %241 = vmatpush.msra.mxu0 %v214
    %242 = vmatpush.msra.mxu0 %v213
    %243 = vmatpush.msra.mxu0 %v212
    %244 = vmatpush.msra.mxu0 %v211
    %245 = vmatmul.f32.gmra.mxu0 %v210
    %v246 = vpop.f32.mrf.mxu0
    %v247 = vadd.f32 %v228, %v246
    %248 = vdwg.mxu0
    %249 = vst [vmem:[#allocation13] sm:$0xff] %v247
    // Predicated region
    $region54: #{tpu_custom_call.1} parent=1 // pred_check
      _
    $region55: #{tpu_custom_call.1} parent=1 // pred_check_branch
      %251 = sbr.rel (0) target = $region57
    $region56: #{tpu_custom_call.1} parent=1 // pred_region
      %253 = vsyncadd [#allocation4], 0
      %s255 = sshll.u32 [#allocation13], 4
      %s256 = int_to_ptr.vmem [resolvable:$true] %s255
      %s257 = sshll.u32 %s7, 4
      %s258 = int_to_ptr.hbm [resolvable:$true] %s257
      %260 = dma.vmem_to_hbm [thread:$0]  %s256, 128, %s258, [#allocation4]
    $region57: #{tpu_custom_call.1} parent=1 // pred_fallthru
      _
    // Predicated region
    $region58: #{tpu_custom_call.1} parent=1 // pred_check
      _
    $region59: #{tpu_custom_call.1} parent=1 // pred_check_branch
      %262 = sbr.rel (0) target = $region61
    $region60: #{tpu_custom_call.1} parent=1 // pred_region
      %264 = dma.done [#allocation4], 128
    $region61: #{tpu_custom_call.1} parent=1 // pred_fallthru
      _
    %265 = vsyncpa [#allocation3], 1
    %266 = vsyncpa [#allocation6], 1
    %267 = vsyncpa [#allocation9], 1
    %268 = vsyncpa [#allocation12], 1
    %269 = vsyncpa [#allocation4], 1

</llo_original>
